<compile_context>
chip_gen: v7x
topology: tpu7x:2x2x1
jax: 0.10.0
libtpu: 0.0.40
codegen_flags: <defaults>
</compile_context>

<pallas_src>
import functools

import jax
import jax.numpy as jnp
from jax.experimental import pallas as pl
from jax.experimental.pallas import tpu as pltpu

LANE = 128      # vreg lane width
SUBLANE = 8     # vreg sublane count (f32)


def _round_up(x, m):
    return (x + m - 1) // m * m


# ----------------------------------------------------------------------------
# Kernel: one batch tile, whole MLP fused. Matmul operands lane-dense (128).
# ----------------------------------------------------------------------------
def _mlp_wc_kernel(x_ref, w1_ref, b1_ref, w2_ref, b2_ref, w3_ref, b3_ref, o_ref):
    x = x_ref[...]                                     # (tm, in_f)

    def dense(a, w_ref, b_ref):
        # MXU matmul in the weight dtype (bf16 ok on v5e/v6e/v7x), f32 accum;
        # bias add / activations stay f32 on the VPU.
        w = w_ref[...]
        acc = jnp.dot(a.astype(w.dtype), w, preferred_element_type=jnp.float32)
        return acc + b_ref[...]

    h1 = jnp.maximum(dense(x, w1_ref, b1_ref), 0.0)    # (tm, 128)
    h2 = jnp.maximum(dense(h1, w2_ref, b2_ref), 0.0)   # (tm, 128)

    # b3 carries -1e30 in the padded class lanes (mask folded into the bias in
    # prepare_params), so exp() underflows those lanes to exactly 0 — no
    # iota/where needed here.
    logits = dense(h2, w3_ref, b3_ref)                 # (tm, 128)

    m = jnp.max(logits, axis=-1, keepdims=True)
    e = jnp.exp(logits - m)
    s = jnp.sum(e, axis=-1, keepdims=True)
    probs = e / s                                      # exact normalization

    # Store only the real class columns (narrow block: last dim == full array
    # dim). Tiny masked store beats writing a 128-wide f32 slab to HBM.
    class_size = o_ref.shape[-1]
    o_ref[...] = probs[:, :class_size].astype(o_ref.dtype)


# ----------------------------------------------------------------------------
# Parameter preparation: pad to the 128-lane boundary, optionally cast weights
# to bf16 (fine on all TPU generations). Biases stay f32; b3's padded class
# lanes hold the -1e30 softmax mask sentinel (must remain f32).
# ----------------------------------------------------------------------------
def prepare_params(params, weight_dtype=jnp.float32):
    w1, b1, w2, b2, w3, b3 = params

    def pad2(a, rows, cols, fill=0.0):
        return jnp.pad(a, ((0, rows - a.shape[0]), (0, cols - a.shape[1])),
                       constant_values=fill)

    in_f = w1.shape[0]
    h1 = _round_up(w1.shape[1], LANE)      # 64 -> 128
    h2 = _round_up(w2.shape[1], LANE)      # 32 -> 128
    cp = _round_up(w3.shape[1], LANE)      # C  -> 128

    w1p = pad2(w1, in_f, h1).astype(weight_dtype)
    w2p = pad2(w2, h1, h2).astype(weight_dtype)
    w3p = pad2(w3, h2, cp).astype(weight_dtype)
    b1p = pad2(b1, 1, h1).astype(jnp.float32)
    b2p = pad2(b2, 1, h2).astype(jnp.float32)
    # Fold the class-padding mask into the fc3 bias.
    b3p = pad2(b3.astype(jnp.float32), 1, cp, fill=-1e30)
    return (w1p, b1p, w2p, b2p, w3p, b3p)


# ----------------------------------------------------------------------------
# Batched forward (the performance path).
# ----------------------------------------------------------------------------
@functools.partial(jax.jit, static_argnames=("class_size", "block_m"))
def mlp_wc_forward_batched(x, padded_params, *, class_size=2, block_m=512):
    """x: (B, 2*input_size), f32 or bf16. Returns softmax probs (B, class_size)."""
    w1, b1, w2, b2, w3, b3 = padded_params
    B, in_f = x.shape
    h1, h2, cp = w1.shape[1], w2.shape[1], w3.shape[1]

    # Tile selection: as big as block_m allows (amortizes per-step overhead for
    # this mem/overhead-bound kernel) but capped at half the batch so the grid
    # keeps >= 2 steps — lets v7x shard the parallel batch axis over both TCs.
    b_r = _round_up(B, SUBLANE)
    tm_cap = _round_up((b_r + 1) // 2, SUBLANE) if b_r >= 2 * SUBLANE else b_r
    tm = max(SUBLANE, min(block_m, tm_cap))

    # No full-batch pad copy when the tile divides the rounded batch (common
    # case); otherwise pad the tail with zero rows (they run through softmax
    # harmlessly and are sliced off below).
    b_pad = _round_up(b_r, tm)
    if b_pad != B:
        x = jnp.pad(x, ((0, b_pad - B), (0, 0)))

    const = lambda i: (0, 0)   # weights / biases resident across grid steps

    out = pl.pallas_call(
        _mlp_wc_kernel,
        out_shape=jax.ShapeDtypeStruct((b_pad, class_size), jnp.float32),
        grid=(b_pad // tm,),
        in_specs=[
            pl.BlockSpec((tm, in_f), lambda i: (i, 0)),   # activations: batch-tiled
            pl.BlockSpec((in_f, h1), const),
            pl.BlockSpec((1, h1), const),
            pl.BlockSpec((h1, h2), const),
            pl.BlockSpec((1, h2), const),
            pl.BlockSpec((h2, cp), const),
            pl.BlockSpec((1, cp), const),
        ],
        out_specs=pl.BlockSpec((tm, class_size), lambda i: (i, 0)),
        compiler_params=pltpu.CompilerParams(
            dimension_semantics=("parallel",),  # v7x: shard batch over both TCs
        ),
    )(x, w1, b1, w2, b2, w3, b3)

    return out[:B] if b_pad != B else out


# ----------------------------------------------------------------------------
# Single-sample forward: exact PyTorch module semantics (embedding.view(1,-1)).
# ----------------------------------------------------------------------------
def mlp_wc_forward(embedding, padded_params, class_size=2):
    x = embedding.reshape(1, -1)
    return mlp_wc_forward_batched(x, padded_params, class_size=class_size)


# ----------------------------------------------------------------------------
# Init + pure-JAX reference.
# ----------------------------------------------------------------------------
def init_params(input_size, class_size=2, key=jax.random.PRNGKey(0)):
    """nn.Linear-style init. PyTorch stores (out, in); we store (in, out) so the
    kernel computes x @ W directly. Biases are (1, out)."""
    def linear(k, fan_in, fan_out):
        kw, kb = jax.random.split(k)
        bound = 1.0 / jnp.sqrt(fan_in)
        w = jax.random.uniform(kw, (fan_in, fan_out), jnp.float32, -bound, bound)
        b = jax.random.uniform(kb, (1, fan_out), jnp.float32, -bound, bound)
        return w, b

    k1, k2, k3 = jax.random.split(key, 3)
    w1, b1 = linear(k1, input_size * 2, 64)
    w2, b2 = linear(k2, 64, 32)
    w3, b3 = linear(k3, 32, class_size)
    return (w1, b1, w2, b2, w3, b3)


def _reference(x, params):
    w1, b1, w2, b2, w3, b3 = params
    h1 = jnp.maximum(x @ w1 + b1, 0.0)
    h2 = jnp.maximum(h1 @ w2 + b2, 0.0)
    return jax.nn.softmax(h2 @ w3 + b3, axis=1)


if __name__ == "__main__":
    input_size = 32
    class_size = 2
    B = 256  # batch of probes for the optimized path

    key = jax.random.PRNGKey(0)
    k_emb, k_par = jax.random.split(key)

    # Each sample = two stacked word embeddings, flattened like .view(1, -1).
    embeddings = jax.random.normal(k_emb, (B, 2, input_size), jnp.float32)
    params = init_params(input_size, class_size, key=k_par)

    # --- single sample: exact module semantics ------------------------------
    pparams_f32 = prepare_params(params, jnp.float32)
    z1 = jax.block_until_ready(mlp_wc_forward(embeddings[0], pparams_f32, class_size))
    z1_ref = _reference(embeddings[0].reshape(1, -1), params)
    assert z1.shape == (1, class_size)
    assert jnp.allclose(z1, z1_ref, atol=2e-3, rtol=2e-3)

    # --- batched forward (f32 activations + weights) -------------------------
    xb = embeddings.reshape(B, -1)
    zb = jax.block_until_ready(
        mlp_wc_forward_batched(xb, pparams_f32, class_size=class_size))
    zb_ref = _reference(xb, params)
    assert zb.shape == (B, class_size)
    assert jnp.allclose(zb, zb_ref, atol=2e-3, rtol=2e-3)
    assert jnp.allclose(jnp.sum(zb, axis=1), 1.0, atol=1e-3)

    # --- batched forward with bf16 activations + bf16 weights ----------------
    pparams_bf16 = prepare_params(params, jnp.bfloat16)
    zb16 = jax.block_until_ready(
        mlp_wc_forward_batched(xb.astype(jnp.bfloat16), pparams_bf16,
                               class_size=class_size))
    assert zb16.shape == (B, class_size)
    assert jnp.allclose(zb16, zb_ref, atol=5e-2, rtol=5e-2)

    print("KERNEL_OK")
</pallas_src>

<mosaic_0001>
module attributes {stable_mosaic.version = 11 : i64} {
  func.func @_mlp_wc_kernel(%arg0: i32, %arg1: memref<8x64xf32, #tpu.memory_space<vmem>>, %arg2: memref<64x128xf32, #tpu.memory_space<vmem>>, %arg3: memref<1x128xf32, #tpu.memory_space<vmem>>, %arg4: memref<128x128xf32, #tpu.memory_space<vmem>>, %arg5: memref<1x128xf32, #tpu.memory_space<vmem>>, %arg6: memref<128x128xf32, #tpu.memory_space<vmem>>, %arg7: memref<1x128xf32, #tpu.memory_space<vmem>>, %arg8: memref<8x2xf32, #tpu.memory_space<vmem>>) attributes {dimension_semantics = [#tpu.dimension_semantics<parallel>], iteration_bounds = array<i64: 1>, scalar_prefetch = 0 : i64, scratch_operands = 0 : i64, tpu.core_type = #tpu.core_type<tc>, window_params = [{transform_indices = @transform_0, window_bounds = array<i64: 8, 64>}, {pipeline_mode = #tpu.pipeline_mode<synchronous>, transform_indices = @transform_1, window_bounds = array<i64: 64, 128>}, {pipeline_mode = #tpu.pipeline_mode<synchronous>, transform_indices = @transform_2, window_bounds = array<i64: 1, 128>}, {pipeline_mode = #tpu.pipeline_mode<synchronous>, transform_indices = @transform_3, window_bounds = array<i64: 128, 128>}, {pipeline_mode = #tpu.pipeline_mode<synchronous>, transform_indices = @transform_4, window_bounds = array<i64: 1, 128>}, {pipeline_mode = #tpu.pipeline_mode<synchronous>, transform_indices = @transform_5, window_bounds = array<i64: 128, 128>}, {pipeline_mode = #tpu.pipeline_mode<synchronous>, transform_indices = @transform_6, window_bounds = array<i64: 1, 128>}, {transform_indices = @transform_7, window_bounds = array<i64: 8, 2>}]} {
    %c0 = arith.constant 0 : index
    %c0_0 = arith.constant 0 : index
    %0 = vector.load %arg1[%c0, %c0_0] : memref<8x64xf32, #tpu.memory_space<vmem>>, vector<8x64xf32>
    %c0_1 = arith.constant 0 : index
    %c0_2 = arith.constant 0 : index
    %1 = vector.load %arg2[%c0_1, %c0_2] : memref<64x128xf32, #tpu.memory_space<vmem>>, vector<64x128xf32>
    %cst = arith.constant dense<0.000000e+00> : vector<8x128xf32>
    %2 = tpu.matmul %0, %1, %cst {dimension_numbers = #tpu.dot_dimension_numbers<[1], [0], [0], [1], [0, 0, 1, 1], [], []>} : vector<8x64xf32>, vector<64x128xf32>, vector<8x128xf32> -> vector<8x128xf32>
    %c0_3 = arith.constant 0 : index
    %c0_4 = arith.constant 0 : index
    %3 = vector.load %arg3[%c0_3, %c0_4] : memref<1x128xf32, #tpu.memory_space<vmem>>, vector<1x128xf32>
    %4 = vector.broadcast %3 : vector<1x128xf32> to vector<8x128xf32>
    %5 = arith.addf %2, %4 : vector<8x128xf32>
    %cst_5 = arith.constant 0.000000e+00 : f32
    %6 = vector.broadcast %cst_5 : f32 to vector<8x128xf32>
    %7 = arith.maximumf %5, %6 : vector<8x128xf32>
    %c0_6 = arith.constant 0 : index
    %c0_7 = arith.constant 0 : index
    %8 = vector.load %arg4[%c0_6, %c0_7] : memref<128x128xf32, #tpu.memory_space<vmem>>, vector<128x128xf32>
    %cst_8 = arith.constant dense<0.000000e+00> : vector<8x128xf32>
    %9 = tpu.matmul %7, %8, %cst_8 {dimension_numbers = #tpu.dot_dimension_numbers<[1], [0], [0], [1], [0, 0, 1, 1], [], []>} : vector<8x128xf32>, vector<128x128xf32>, vector<8x128xf32> -> vector<8x128xf32>
    %c0_9 = arith.constant 0 : index
    %c0_10 = arith.constant 0 : index
    %10 = vector.load %arg5[%c0_9, %c0_10] : memref<1x128xf32, #tpu.memory_space<vmem>>, vector<1x128xf32>
    %11 = vector.broadcast %10 : vector<1x128xf32> to vector<8x128xf32>
    %12 = arith.addf %9, %11 : vector<8x128xf32>
    %cst_11 = arith.constant 0.000000e+00 : f32
    %13 = vector.broadcast %cst_11 : f32 to vector<8x128xf32>
    %14 = arith.maximumf %12, %13 : vector<8x128xf32>
    %c0_12 = arith.constant 0 : index
    %c0_13 = arith.constant 0 : index
    %15 = vector.load %arg6[%c0_12, %c0_13] : memref<128x128xf32, #tpu.memory_space<vmem>>, vector<128x128xf32>
    %cst_14 = arith.constant dense<0.000000e+00> : vector<8x128xf32>
    %16 = tpu.matmul %14, %15, %cst_14 {dimension_numbers = #tpu.dot_dimension_numbers<[1], [0], [0], [1], [0, 0, 1, 1], [], []>} : vector<8x128xf32>, vector<128x128xf32>, vector<8x128xf32> -> vector<8x128xf32>
    %c0_15 = arith.constant 0 : index
    %c0_16 = arith.constant 0 : index
    %17 = vector.load %arg7[%c0_15, %c0_16] : memref<1x128xf32, #tpu.memory_space<vmem>>, vector<1x128xf32>
    %18 = vector.broadcast %17 : vector<1x128xf32> to vector<8x128xf32>
    %19 = arith.addf %16, %18 : vector<8x128xf32>
    %cst_17 = arith.constant dense<0xFF800000> : vector<8xf32>
    %20 = vector.multi_reduction <maximumf>, %19, %cst_17 [1] : vector<8x128xf32> to vector<8xf32>
    %21 = vector.shape_cast %20 : vector<8xf32> to vector<8x1xf32>
    %22 = vector.broadcast %21 : vector<8x1xf32> to vector<8x128xf32>
    %23 = arith.subf %19, %22 : vector<8x128xf32>
    %24 = math.exp %23 : vector<8x128xf32>
    %cst_18 = arith.constant dense<0.000000e+00> : vector<8xf32>
    %25 = vector.multi_reduction <add>, %24, %cst_18 [1] : vector<8x128xf32> to vector<8xf32>
    %26 = vector.shape_cast %25 : vector<8xf32> to vector<8x1xf32>
    %27 = vector.broadcast %26 : vector<8x1xf32> to vector<8x128xf32>
    %28 = arith.divf %24, %27 : vector<8x128xf32>
    %29 = vector.extract_strided_slice %28 {offsets = [0, 0], sizes = [8, 2], strides = [1, 1]} : vector<8x128xf32> to vector<8x2xf32>
    %c0_19 = arith.constant 0 : index
    %c0_20 = arith.constant 0 : index
    %30 = vector.load %arg8[%c0_19, %c0_20] : memref<8x2xf32, #tpu.memory_space<vmem>>, vector<8x2xf32>
    tpu.vector_store %arg8[%c0_19, %c0_20], %29 {strides = array<i32>} : memref<8x2xf32, #tpu.memory_space<vmem>>, vector<8x2xf32>,
    return
  }
  func.func @transform_0(%arg0: i32) -> (i32, i32) {
    %c0_i32 = arith.constant 0 : i32
    %c0_i32_0 = arith.constant 0 : i32
    return %arg0, %c0_i32 : i32, i32
  }
  func.func @transform_1(%arg0: i32) -> (i32, i32) {
    %c0_i32 = arith.constant 0 : i32
    %c0_i32_0 = arith.constant 0 : i32
    %c0_i32_1 = arith.constant 0 : i32
    return %c0_i32, %c0_i32_0 : i32, i32
  }
  func.func @transform_2(%arg0: i32) -> (i32, i32) {
    %c0_i32 = arith.constant 0 : i32
    %c0_i32_0 = arith.constant 0 : i32
    %c0_i32_1 = arith.constant 0 : i32
    return %c0_i32, %c0_i32_0 : i32, i32
  }
  func.func @transform_3(%arg0: i32) -> (i32, i32) {
    %c0_i32 = arith.constant 0 : i32
    %c0_i32_0 = arith.constant 0 : i32
    %c0_i32_1 = arith.constant 0 : i32
    return %c0_i32, %c0_i32_0 : i32, i32
  }
  func.func @transform_4(%arg0: i32) -> (i32, i32) {
    %c0_i32 = arith.constant 0 : i32
    %c0_i32_0 = arith.constant 0 : i32
    %c0_i32_1 = arith.constant 0 : i32
    return %c0_i32, %c0_i32_0 : i32, i32
  }
  func.func @transform_5(%arg0: i32) -> (i32, i32) {
    %c0_i32 = arith.constant 0 : i32
    %c0_i32_0 = arith.constant 0 : i32
    %c0_i32_1 = arith.constant 0 : i32
    return %c0_i32, %c0_i32_0 : i32, i32
  }
  func.func @transform_6(%arg0: i32) -> (i32, i32) {
    %c0_i32 = arith.constant 0 : i32
    %c0_i32_0 = arith.constant 0 : i32
    %c0_i32_1 = arith.constant 0 : i32
    return %c0_i32, %c0_i32_0 : i32, i32
  }
  func.func @transform_7(%arg0: i32) -> (i32, i32) {
    %c0_i32 = arith.constant 0 : i32
    %c0_i32_0 = arith.constant 0 : i32
    return %arg0, %c0_i32 : i32, i32
  }
}

</mosaic_0001>

<llo_original>
// kernel: mlp_wc_forward_batched.1
$region0: #{mlp_wc_forward_batched.1}
  #allocation0 [shape = 'u32[]', space=smem, size = 0x4, offset = 0x4, fixed_abs, tag = 'smem constant byte address 0x4 - core index']
  #allocation1 [shape = 'u32[144,128]{1,0:T(1,128)}', space=vmem, size = 0x12000, scoped, tag = 'internal scratch']
  %s0 = inlined_call_operand.vmem [shape: f32[8,64], index: 0, kind: input, shape index: {}]
  %s1 = inlined_call_operand.hbm [shape: f32[64,128], index: 1, kind: input, shape index: {}]
  %s2 = inlined_call_operand.vmem [shape: f32[1,128], index: 2, kind: input, shape index: {}]
  %s3 = inlined_call_operand.hbm [shape: f32[128,128], index: 3, kind: input, shape index: {}]
  %s4 = inlined_call_operand.vmem [shape: f32[1,128], index: 4, kind: input, shape index: {}]
  %s5 = inlined_call_operand.hbm [shape: f32[128,128], index: 5, kind: input, shape index: {}]
  %s6 = inlined_call_operand.vmem [shape: f32[1,128], index: 6, kind: input, shape index: {}]
  %s7 = inlined_call_operand.vmem [shape: f32[8,2], index: 7, kind: output, shape index: {}]
  %s8 = sld [smem:[#allocation0]]
  $region50: #{mlp_wc_forward_batched.1} parent=0
    _
  %s10 = ssub.s32 1, %s8
  %s11 = scalar_select 0, %s10, %s8
  $region1: #{mlp_wc_forward_batched.1} parent=0
    #allocation2 [shape = 'u8[32768]{0}', space=vmem, size = 0x8000, scoped, tag = 'input window, operand 1, single buffered']
    #allocation3 [shape = 's32[1]{0}', space=sflag, size = 0x4, scoped, tag = 'scoped memory for mlp_wc_forward_batched.1']
    #allocation4 [shape = 'u8[65536]{0}', space=vmem, size = 0x10000, scoped, tag = 'input window, operand 3, single buffered']
    #allocation5 [shape = 's32[1]{0}', space=sflag, size = 0x4, scoped, tag = 'scoped memory for mlp_wc_forward_batched.1']
    #allocation6 [shape = 'u8[65536]{0}', space=vmem, size = 0x10000, scoped, tag = 'input window, operand 5, single buffered']
    %12 = vsyncpa [#allocation3], 0
    %13 = vsyncpa [#allocation5], 0
    // Predicated region
    $region2: #{mlp_wc_forward_batched.1} parent=1 // pred_check
      _
    $region3: #{mlp_wc_forward_batched.1} parent=1 // pred_check_branch
      %15 = sbr.rel (0) target = $region5
    $region4: #{mlp_wc_forward_batched.1} parent=1 // pred_region
      _
    $region5: #{mlp_wc_forward_batched.1} parent=1 // pred_fallthru
      _
    // Predicated region
    $region6: #{mlp_wc_forward_batched.1} parent=1 // pred_check
      _
    $region7: #{mlp_wc_forward_batched.1} parent=1 // pred_check_branch
      %17 = sbr.rel (0) target = $region9
    $region8: #{mlp_wc_forward_batched.1} parent=1 // pred_region
      %s19 = ssub.s32 1024, 1024
      %20 = vsyncadd [#allocation3], %s19
      %s21 = sshll.u32 [#allocation2], 4
      %s22 = int_to_ptr.vmem [resolvable:$true] %s21
      %27 = dma.hbm_to_vmem [thread:$0]  %s1, 1024, %s22, [#allocation3], 128, 128, 8
    $region9: #{mlp_wc_forward_batched.1} parent=1 // pred_fallthru
      _
    // Predicated region
    $region10: #{mlp_wc_forward_batched.1} parent=1 // pred_check
      _
    $region11: #{mlp_wc_forward_batched.1} parent=1 // pred_check_branch
      %29 = sbr.rel (0) target = $region13
    $region12: #{mlp_wc_forward_batched.1} parent=1 // pred_region
      _
    $region13: #{mlp_wc_forward_batched.1} parent=1 // pred_fallthru
      _
    // Predicated region
    $region14: #{mlp_wc_forward_batched.1} parent=1 // pred_check
      _
    $region15: #{mlp_wc_forward_batched.1} parent=1 // pred_check_branch
      %31 = sbr.rel (0) target = $region17
    $region16: #{mlp_wc_forward_batched.1} parent=1 // pred_region
      %s33 = ssub.s32 2048, 2048
      %34 = vsyncadd [#allocation5], %s33
      %s35 = sshll.u32 [#allocation4], 4
      %s36 = int_to_ptr.vmem [resolvable:$true] %s35
      %41 = dma.hbm_to_vmem [thread:$0]  %s3, 2048, %s36, [#allocation5], 128, 128, 8
    $region17: #{mlp_wc_forward_batched.1} parent=1 // pred_fallthru
      _
    // Predicated region
    $region18: #{mlp_wc_forward_batched.1} parent=1 // pred_check
      _
    $region19: #{mlp_wc_forward_batched.1} parent=1 // pred_check_branch
      %43 = sbr.rel (0) target = $region21
    $region20: #{mlp_wc_forward_batched.1} parent=1 // pred_region
      _
    $region21: #{mlp_wc_forward_batched.1} parent=1 // pred_fallthru
      _
    // Predicated region
    $region22: #{mlp_wc_forward_batched.1} parent=1 // pred_check
      _
    $region23: #{mlp_wc_forward_batched.1} parent=1 // pred_check_branch
      %45 = sbr.rel (0) target = $region25
    $region24: #{mlp_wc_forward_batched.1} parent=1 // pred_region
      %s47 = ssub.s32 2048, 2048
      %48 = vsyncadd [#allocation5], %s47
      %s49 = sshll.u32 [#allocation6], 4
      %s50 = int_to_ptr.vmem [resolvable:$true] %s49
      %55 = dma.hbm_to_vmem [thread:$0]  %s5, 2048, %s50, [#allocation5], 128, 128, 8
    $region25: #{mlp_wc_forward_batched.1} parent=1 // pred_fallthru
      _
    // Predicated region
    $region26: #{mlp_wc_forward_batched.1} parent=1 // pred_check
      _
    $region27: #{mlp_wc_forward_batched.1} parent=1 // pred_check_branch
      %57 = sbr.rel (0) target = $region29
    $region28: #{mlp_wc_forward_batched.1} parent=1 // pred_region
      _
    $region29: #{mlp_wc_forward_batched.1} parent=1 // pred_fallthru
      _
    // Predicated region
    $region30: #{mlp_wc_forward_batched.1} parent=1 // pred_check
      _
    $region31: #{mlp_wc_forward_batched.1} parent=1 // pred_check_branch
      %59 = sbr.rel (0) target = $region33
    $region32: #{mlp_wc_forward_batched.1} parent=1 // pred_region
      %60 = dma.done [#allocation3], 1024
    $region33: #{mlp_wc_forward_batched.1} parent=1 // pred_fallthru
      _
    // Predicated region
    $region34: #{mlp_wc_forward_batched.1} parent=1 // pred_check
      _
    $region35: #{mlp_wc_forward_batched.1} parent=1 // pred_check_branch
      %62 = sbr.rel (0) target = $region37
    $region36: #{mlp_wc_forward_batched.1} parent=1 // pred_region
      %63 = dma.done [#allocation5], 2048
    $region37: #{mlp_wc_forward_batched.1} parent=1 // pred_fallthru
      _
    // Predicated region
    $region38: #{mlp_wc_forward_batched.1} parent=1 // pred_check
      _
    $region39: #{mlp_wc_forward_batched.1} parent=1 // pred_check_branch
      %65 = sbr.rel (0) target = $region41
    $region40: #{mlp_wc_forward_batched.1} parent=1 // pred_region
      %66 = dma.done [#allocation5], 2048
    $region41: #{mlp_wc_forward_batched.1} parent=1 // pred_fallthru
      _
    %v67 = vld [vmem:[%s0] sm:$0xff]
    %v68 = vld [vmem:[#allocation2] sm:$0xff]
    %v69 = vld [vmem:[#allocation2 + $0x8] sm:$0xff]
    %v70 = vld [vmem:[#allocation2 + $0x10] sm:$0xff]
    %v71 = vld [vmem:[#allocation2 + $0x18] sm:$0xff]
    %v72 = vld [vmem:[#allocation2 + $0x20] sm:$0xff]
    %v73 = vld [vmem:[#allocation2 + $0x28] sm:$0xff]
    %v74 = vld [vmem:[#allocation2 + $0x30] sm:$0xff]
    %v75 = vld [vmem:[#allocation2 + $0x38] sm:$0xff]
    %v76 = vld [vmem:[%s2] sm:$0x1]
    %v78 = vlaneseq
    %v79 = vshrl.u32 %v78, 7
    %v80 = vsub.s32 0, %v79
    %v81 = vrot.slane %v76, %v80
    %vm83 = vcmask 523264
    %v85 = vsel %vm83, %v67, 0
    %87 = vmatprep.subr.mxu0 0.0
    %88 = vmatpush1.msra.mxu0 %v68
    %89 = vmatprep.subr.mxu0 0.0
    %90 = vmatpush1.msra.mxu0 %v69
    %91 = vmatprep.subr.mxu0 0.0
    %92 = vmatpush1.msra.mxu0 %v70
    %93 = vmatprep.subr.mxu0 0.0
    %94 = vmatpush1.msra.mxu0 %v71
    %95 = vmatprep.subr.mxu0 0.0
    %96 = vmatpush1.msra.mxu0 %v72
    %97 = vmatprep.subr.mxu0 0.0
    %98 = vmatpush1.msra.mxu0 %v73
    %99 = vmatprep.subr.mxu0 0.0
    %100 = vmatpush1.msra.mxu0 %v74
    %101 = vmatprep.subr.mxu0 0.0
    %102 = vmatpush1.msra.mxu0 %v75
    %103 = vmatprep.subr.mxu0 0.0
    %104 = vmatpush1.msra.mxu0 0.0
    %105 = vmatprep.subr.mxu0 0.0
    %106 = vmatpush1.msra.mxu0 0.0
    %107 = vmatprep.subr.mxu0 0.0
    %108 = vmatpush1.msra.mxu0 0.0
    %109 = vmatprep.subr.mxu0 0.0
    %110 = vmatpush1.msra.mxu0 0.0
    %111 = vmatprep.subr.mxu0 0.0
    %112 = vmatpush1.msra.mxu0 0.0
    %113 = vmatprep.subr.mxu0 0.0
    %114 = vmatpush1.msra.mxu0 0.0
    %115 = vmatprep.subr.mxu0 0.0
    %116 = vmatpush1.msra.mxu0 0.0
    %117 = vmatprep.subr.mxu0 0.0
    %118 = vmatpush1.msra.mxu0 0.0
    %119 = vmatprep.subr.mxu0 0.0
    %120 = vmatpush1.msra.mxu0 0.0
    %121 = vmatprep.subr.mxu0 0.0
    %122 = vmatpush1.msra.mxu0 0.0
    %123 = vmatprep.subr.mxu0 0.0
    %124 = vmatpush1.msra.mxu0 0.0
    %125 = vmatprep.subr.mxu0 0.0
    %126 = vmatpush1.msra.mxu0 0.0
    %127 = vmatprep.subr.mxu0 0.0
    %128 = vmatpush1.msra.mxu0 0.0
    %129 = vmatprep.subr.mxu0 0.0
    %130 = vmatpush1.msra.mxu0 0.0
    %131 = vmatprep.subr.mxu0 0.0
    %132 = vmatpush1.msra.mxu0 0.0
    %133 = vmatprep.subr.mxu0 0.0
    %134 = vmatpush1.msra.mxu0 0.0
    %135 = vmatprep.subr.mxu0 0.0
    %136 = vmatpush1.msra.mxu0 0.0
    %137 = vmatprep.subr.mxu0 0.0
    %138 = vmatpush1.msra.mxu0 0.0
    %139 = vmatprep.subr.mxu0 0.0
    %140 = vmatpush1.msra.mxu0 0.0
    %141 = vmatprep.subr.mxu0 0.0
    %142 = vmatpush1.msra.mxu0 0.0
    %143 = vmatprep.subr.mxu0 0.0
    %144 = vmatpush1.msra.mxu0 0.0
    %145 = vmatprep.subr.mxu0 0.0
    %146 = vmatpush1.msra.mxu0 0.0
    %147 = vmatprep.subr.mxu0 0.0
    %148 = vmatpush1.msra.mxu0 0.0
    %149 = vmatprep.subr.mxu0 0.0
    %150 = vmatpush1.msra.mxu0 0.0
    %151 = vmatprep.mubr.f32.mxu0 0.0
    %152 = vmatmul.mubr.f32.gmra.mrb[0].mxu0 %v85
    %v153 = vpop.f32.mrb[0].mxu0
    %v154 = vadd.f32 %v81, %v153
    %v155 = vpop.f32.mrb[0].mxu0
    %156 = vdwg.mxu0
    %v157 = vmax.f32 %v154, 0.0
    %v158 = vld [vmem:[#allocation4] sm:$0xff]
    %v159 = vld [vmem:[#allocation4 + $0x8] sm:$0xff]
    %v160 = vld [vmem:[#allocation4 + $0x10] sm:$0xff]
    %v161 = vld [vmem:[#allocation4 + $0x18] sm:$0xff]
    %v162 = vld [vmem:[#allocation4 + $0x20] sm:$0xff]
    %v163 = vld [vmem:[#allocation4 + $0x28] sm:$0xff]
    %v164 = vld [vmem:[#allocation4 + $0x30] sm:$0xff]
    %v165 = vld [vmem:[#allocation4 + $0x38] sm:$0xff]
    %v166 = vld [vmem:[#allocation4 + $0x40] sm:$0xff]
    %v167 = vld [vmem:[#allocation4 + $0x48] sm:$0xff]
    %v168 = vld [vmem:[#allocation4 + $0x50] sm:$0xff]
    %v169 = vld [vmem:[#allocation4 + $0x58] sm:$0xff]
    %v170 = vld [vmem:[#allocation4 + $0x60] sm:$0xff]
    %v171 = vld [vmem:[#allocation4 + $0x68] sm:$0xff]
    %v172 = vld [vmem:[#allocation4 + $0x70] sm:$0xff]
    %v173 = vld [vmem:[#allocation4 + $0x78] sm:$0xff]
    %v174 = vld [vmem:[%s4] sm:$0x1]
    %v176 = vlaneseq
    %v177 = vshrl.u32 %v176, 7
    %v178 = vsub.s32 0, %v177
    %v179 = vrot.slane %v174, %v178
    %181 = vmatprep.subr.mxu0 0.0
    %182 = vmatpush1.msra.mxu0 %v158
    %183 = vmatprep.subr.mxu0 0.0
    %184 = vmatpush1.msra.mxu0 %v159
    %185 = vmatprep.subr.mxu0 0.0
    %186 = vmatpush1.msra.mxu0 %v160
    %187 = vmatprep.subr.mxu0 0.0
    %188 = vmatpush1.msra.mxu0 %v161
    %189 = vmatprep.subr.mxu0 0.0
    %190 = vmatpush1.msra.mxu0 %v162
    %191 = vmatprep.subr.mxu0 0.0
    %192 = vmatpush1.msra.mxu0 %v163
    %193 = vmatprep.subr.mxu0 0.0
    %194 = vmatpush1.msra.mxu0 %v164
    %195 = vmatprep.subr.mxu0 0.0
    %196 = vmatpush1.msra.mxu0 %v165
    %197 = vmatprep.subr.mxu0 0.0
    %198 = vmatpush1.msra.mxu0 %v166
    %199 = vmatprep.subr.mxu0 0.0
    %200 = vmatpush1.msra.mxu0 %v167
    %201 = vmatprep.subr.mxu0 0.0
    %202 = vmatpush1.msra.mxu0 %v168
    %203 = vmatprep.subr.mxu0 0.0
    %204 = vmatpush1.msra.mxu0 %v169
    %205 = vmatprep.subr.mxu0 0.0
    %206 = vmatpush1.msra.mxu0 %v170
    %207 = vmatprep.subr.mxu0 0.0
    %208 = vmatpush1.msra.mxu0 %v171
    %209 = vmatprep.subr.mxu0 0.0
    %210 = vmatpush1.msra.mxu0 %v172
    %211 = vmatprep.subr.mxu0 0.0
    %212 = vmatpush1.msra.mxu0 %v173
    %213 = vmatprep.subr.mxu0 0.0
    %214 = vmatpush1.msra.mxu0 0.0
    %215 = vmatprep.subr.mxu0 0.0
    %216 = vmatpush1.msra.mxu0 0.0
    %217 = vmatprep.subr.mxu0 0.0
    %218 = vmatpush1.msra.mxu0 0.0
    %219 = vmatprep.subr.mxu0 0.0
    %220 = vmatpush1.msra.mxu0 0.0
    %221 = vmatprep.subr.mxu0 0.0
    %222 = vmatpush1.msra.mxu0 0.0
    %223 = vmatprep.subr.mxu0 0.0
    %224 = vmatpush1.msra.mxu0 0.0
    %225 = vmatprep.subr.mxu0 0.0
    %226 = vmatpush1.msra.mxu0 0.0
    %227 = vmatprep.subr.mxu0 0.0
    %228 = vmatpush1.msra.mxu0 0.0
    %229 = vmatprep.subr.mxu0 0.0
    %230 = vmatpush1.msra.mxu0 0.0
    %231 = vmatprep.subr.mxu0 0.0
    %232 = vmatpush1.msra.mxu0 0.0
    %233 = vmatprep.subr.mxu0 0.0
    %234 = vmatpush1.msra.mxu0 0.0
    %235 = vmatprep.subr.mxu0 0.0
    %236 = vmatpush1.msra.mxu0 0.0
    %237 = vmatprep.subr.mxu0 0.0
    %238 = vmatpush1.msra.mxu0 0.0
    %239 = vmatprep.subr.mxu0 0.0
    %240 = vmatpush1.msra.mxu0 0.0
    %241 = vmatprep.subr.mxu0 0.0
    %242 = vmatpush1.msra.mxu0 0.0
    %243 = vmatprep.subr.mxu0 0.0
    %244 = vmatpush1.msra.mxu0 0.0
    %245 = vmatprep.mubr.f32.mxu0 0.0
    %246 = vmatmul.mubr.f32.gmra.mrb[0].mxu0 %v157
    %v247 = vpop.f32.mrb[0].mxu0
    %v248 = vadd.f32 %v179, %v247
    %v249 = vpop.f32.mrb[0].mxu0
    %250 = vdwg.mxu0
    %v251 = vmax.f32 %v248, 0.0
    %v252 = vld [vmem:[#allocation6] sm:$0xff]
    %v253 = vld [vmem:[#allocation6 + $0x8] sm:$0xff]
    %v254 = vld [vmem:[#allocation6 + $0x10] sm:$0xff]
    %v255 = vld [vmem:[#allocation6 + $0x18] sm:$0xff]
    %v256 = vld [vmem:[#allocation6 + $0x20] sm:$0xff]
    %v257 = vld [vmem:[#allocation6 + $0x28] sm:$0xff]
    %v258 = vld [vmem:[#allocation6 + $0x30] sm:$0xff]
    %v259 = vld [vmem:[#allocation6 + $0x38] sm:$0xff]
    %v260 = vld [vmem:[#allocation6 + $0x40] sm:$0xff]
    %v261 = vld [vmem:[#allocation6 + $0x48] sm:$0xff]
    %v262 = vld [vmem:[#allocation6 + $0x50] sm:$0xff]
    %v263 = vld [vmem:[#allocation6 + $0x58] sm:$0xff]
    %v264 = vld [vmem:[#allocation6 + $0x60] sm:$0xff]
    %v265 = vld [vmem:[#allocation6 + $0x68] sm:$0xff]
    %v266 = vld [vmem:[#allocation6 + $0x70] sm:$0xff]
    %v267 = vld [vmem:[#allocation6 + $0x78] sm:$0xff]
    %v268 = vld [vmem:[%s6] sm:$0x1]
    %v270 = vlaneseq
    %v271 = vshrl.u32 %v270, 7
    %v272 = vsub.s32 0, %v271
    %v273 = vrot.slane %v268, %v272
    %275 = vmatprep.subr.mxu0 0.0
    %276 = vmatpush1.msra.mxu0 %v252
    %277 = vmatprep.subr.mxu0 0.0
    %278 = vmatpush1.msra.mxu0 %v253
    %279 = vmatprep.subr.mxu0 0.0
    %280 = vmatpush1.msra.mxu0 %v254
    %281 = vmatprep.subr.mxu0 0.0
    %282 = vmatpush1.msra.mxu0 %v255
    %283 = vmatprep.subr.mxu0 0.0
    %284 = vmatpush1.msra.mxu0 %v256
    %285 = vmatprep.subr.mxu0 0.0
    %286 = vmatpush1.msra.mxu0 %v257
    %287 = vmatprep.subr.mxu0 0.0
    %288 = vmatpush1.msra.mxu0 %v258
    %289 = vmatprep.subr.mxu0 0.0
    %290 = vmatpush1.msra.mxu0 %v259
    %291 = vmatprep.subr.mxu0 0.0
    %292 = vmatpush1.msra.mxu0 %v260
    %293 = vmatprep.subr.mxu0 0.0
    %294 = vmatpush1.msra.mxu0 %v261
    %295 = vmatprep.subr.mxu0 0.0
    %296 = vmatpush1.msra.mxu0 %v262
    %297 = vmatprep.subr.mxu0 0.0
    %298 = vmatpush1.msra.mxu0 %v263
    %299 = vmatprep.subr.mxu0 0.0
    %300 = vmatpush1.msra.mxu0 %v264
    %301 = vmatprep.subr.mxu0 0.0
    %302 = vmatpush1.msra.mxu0 %v265
    %303 = vmatprep.subr.mxu0 0.0
    %304 = vmatpush1.msra.mxu0 %v266
    %305 = vmatprep.subr.mxu0 0.0
    %306 = vmatpush1.msra.mxu0 %v267
    %307 = vmatprep.subr.mxu0 0.0
    %308 = vmatpush1.msra.mxu0 0.0
    %309 = vmatprep.subr.mxu0 0.0
    %310 = vmatpush1.msra.mxu0 0.0
    %311 = vmatprep.subr.mxu0 0.0
    %312 = vmatpush1.msra.mxu0 0.0
    %313 = vmatprep.subr.mxu0 0.0
    %314 = vmatpush1.msra.mxu0 0.0
    %315 = vmatprep.subr.mxu0 0.0
    %316 = vmatpush1.msra.mxu0 0.0
    %317 = vmatprep.subr.mxu0 0.0
    %318 = vmatpush1.msra.mxu0 0.0
    %319 = vmatprep.subr.mxu0 0.0
    %320 = vmatpush1.msra.mxu0 0.0
    %321 = vmatprep.subr.mxu0 0.0
    %322 = vmatpush1.msra.mxu0 0.0
    %323 = vmatprep.subr.mxu0 0.0
    %324 = vmatpush1.msra.mxu0 0.0
    %325 = vmatprep.subr.mxu0 0.0
    %326 = vmatpush1.msra.mxu0 0.0
    %327 = vmatprep.subr.mxu0 0.0
    %328 = vmatpush1.msra.mxu0 0.0
    %329 = vmatprep.subr.mxu0 0.0
    %330 = vmatpush1.msra.mxu0 0.0
    %331 = vmatprep.subr.mxu0 0.0
    %332 = vmatpush1.msra.mxu0 0.0
    %333 = vmatprep.subr.mxu0 0.0
    %334 = vmatpush1.msra.mxu0 0.0
    %335 = vmatprep.subr.mxu0 0.0
    %336 = vmatpush1.msra.mxu0 0.0
    %337 = vmatprep.subr.mxu0 0.0
    %338 = vmatpush1.msra.mxu0 0.0
    %339 = vmatprep.mubr.f32.mxu0 0.0
    %340 = vmatmul.mubr.f32.gmra.mrb[0].mxu0 %v251
    %v341 = vpop.f32.mrb[0].mxu0
    %v342 = vadd.f32 %v273, %v341
    %v343 = vpop.f32.mrb[0].mxu0
    %344 = vdwg.mxu0
    %345 = vmax.xlane.f32.xlu0 %v342
    %v346 = vpop.xlane.xlu0 %345
    %v347 = vsub.f32 %v342, %v346
    %v348 = vmul.f32 %v347, 1.442695
    %v349 = vpow.pop %v348
    %350 = vadd.xlane.f32.xlu0 %v349
    %v351 = vpop.xlane.xlu0 %350
    %v352 = vrcp.pop %v351
    %v353 = vmul.f32 %v349, %v352
    %vm354 = vcmask 15360
    %355 = vst.msk [vmem:[%s7] sm:$0xff] %vm354, %v353
    // Predicated region
    $region42: #{mlp_wc_forward_batched.1} parent=1 // pred_check
      _
    $region43: #{mlp_wc_forward_batched.1} parent=1 // pred_check_branch
      %357 = sbr.rel (0) target = $region45
    $region44: #{mlp_wc_forward_batched.1} parent=1 // pred_region
      _
    $region45: #{mlp_wc_forward_batched.1} parent=1 // pred_fallthru
      _
    // Predicated region
    $region46: #{mlp_wc_forward_batched.1} parent=1 // pred_check
      _
    $region47: #{mlp_wc_forward_batched.1} parent=1 // pred_check_branch
      %359 = sbr.rel (0) target = $region49
    $region48: #{mlp_wc_forward_batched.1} parent=1 // pred_region
      _
    $region49: #{mlp_wc_forward_batched.1} parent=1 // pred_fallthru
      _
    %360 = vsyncpa [#allocation3], 1
    %361 = vsyncpa [#allocation5], 1

</llo_original>
